<compile_context>
chip_gen: v5e
topology: v5e:2x2
jax: 0.10.0
libtpu: 0.0.40
codegen_flags: <defaults>
</compile_context>

<pallas_src>
import jax
import jax.numpy as jnp
from jax.experimental import pallas as pl
from jax.experimental.pallas import tpu as pltpu


def _round_up(x, m):
    return ((x + m - 1) // m) * m


def _proj_kernel(x_ref, uw_ref, b_ref, left_ref, right_ref):
    """Fused per-batch projections: [left | right] = x @ [U | W]; bias folded into left."""
    rp = left_ref.shape[2]
    x = x_ref[0]                                                     # (Sp, H)
    lr = jnp.dot(x, uw_ref[...], preferred_element_type=jnp.float32)  # (Sp, 2*Rp) f32
    left_ref[0] = (lr[:, :rp] + b_ref[...]).astype(left_ref.dtype)   # bias folded
    right_ref[0] = lr[:, rp:].astype(right_ref.dtype)


def _relation_tile_kernel(left_ref, right_ref, v_ref, sig_ref, pred_ref):
    """One (T, T) tile of the relation plane, processed in row chunks."""
    tile_j, rp = right_ref.shape[1], right_ref.shape[2]
    n_chunks, cs, chunk_m = sig_ref.shape[2], sig_ref.shape[3], sig_ref.shape[4]
    chunk_rows = chunk_m // tile_j

    right = right_ref[0]                                             # (T, Rp)
    v = v_ref[...]                                                   # (Rp, Cp)
    # Hoist the sublane broadcast of `right` out of the chunk loop (JAX does
    # not CSE broadcast_in_dim inside loops).
    right_b = jnp.broadcast_to(right[None, :, :], (chunk_rows, tile_j, rp))

    def body(ci, carry):
        row0 = ci * chunk_rows
        left_c = left_ref[0, pl.ds(row0, chunk_rows), :]             # (chunk_rows, Rp)
        # act[i, j, r] = relu(left[i, r] + right[j, r]); chunked so live VMEM
        # stays ~1-2 MiB regardless of T (fits default scoped VMEM everywhere).
        act = jnp.maximum(left_c[:, None, :] + right_b, 0.0)         # (chunk_rows, T, Rp)
        act2 = act.reshape(chunk_m, rp)                              # layout-free reshape
        # Class contraction on the MXU, f32 accumulation.  f32 operands keep the
        # interpret/CPU path working (bf16 x bf16 -> f32 is not supported there);
        # pass compute_dtype=bf16 from the wrapper for peak TPU throughput.
        scores = jnp.dot(act2, v, preferred_element_type=jnp.float32)  # (chunk_m, Cp)
        # Slice to the (sublane-padded) real class count BEFORE the transpose:
        # the XLU only moves (chunk_m, Cs) instead of (chunk_m, 128).
        scores_t = scores[:, :cs].T                                  # (Cs, chunk_m) lane-dense
        sig_ref[0, 0, ci, :, :] = jax.nn.sigmoid(scores_t)
        # round(sigmoid(s)) == 1  <=>  s > 0  (0.5 rounds to 0), so this matches
        # torch.round(torch.sigmoid(scores)) exactly; int8 cuts writeback bytes.
        pred_ref[0, 0, ci, :, :] = (scores_t > 0.0).astype(jnp.int8)
        return carry

    jax.lax.fori_loop(0, n_chunks, body, 0)


def relation_extracter_forward(encoded_text, U, W, V, bias, attention_mask,
                               *, tile=128, compute_dtype=jnp.float32):
    """Pallas implementation of relation_extracter.forward (inference path).

    compute_dtype: dtype of the MXU operands / activation math.  Default f32
    (exactly reproduces the fp32 PyTorch math and runs on every backend);
    jnp.bfloat16 is an opt-in fast path for real v6e/v7x hardware.
    """
    B, S, H = encoded_text.shape
    R = U.shape[1]
    C = V.shape[1]

    Rp = _round_up(R, 128)                    # lane-pad relation-embedding dim
    Cp = _round_up(C, 128)                    # pad V's class dim for the MXU
    Cs = _round_up(C, 8)                      # sublane-padded classes actually stored
    T = _round_up(min(tile, _round_up(S, 16)), 16)   # T % 16 == 0
    Sp = _round_up(S, T)
    nI = nJ = Sp // T
    chunk_rows = 8 if T <= 64 else 16         # chunk_rows * T is a multiple of 128
    n_chunks = T // chunk_rows
    chunk_m = chunk_rows * T

    f32 = jnp.float32
    cd = compute_dtype
    # Zero padding is numerically exact (relu(0+0)=0 contributes 0 through V);
    # padded S rows are sliced off at the end.
    U_p = jnp.pad(U.astype(f32), ((0, 0), (0, Rp - R)))
    W_p = jnp.pad(W.astype(f32), ((0, 0), (0, Rp - R)))
    UW_p = jnp.concatenate([U_p, W_p], axis=1).astype(cd)            # (H, 2*Rp)
    V_p = jnp.pad(V.astype(f32), ((0, Rp - R), (0, Cp - C))).astype(cd)
    b_p = jnp.pad(bias.astype(f32), (0, Rp - R)).reshape(1, Rp)      # f32 (post-accum add)
    x_p = jnp.pad(encoded_text.astype(f32),
                  ((0, 0), (0, Sp - S), (0, 0))).astype(cd)

    # ---- Stage 1: fused per-batch projections (bias folded into `left`). ----
    left, right = pl.pallas_call(
        _proj_kernel,
        out_shape=(
            jax.ShapeDtypeStruct((B, Sp, Rp), cd),
            jax.ShapeDtypeStruct((B, Sp, Rp), cd),
        ),
        grid=(B,),
        in_specs=[
            pl.BlockSpec((1, Sp, H), lambda b: (b, 0, 0)),           # encoded_text
            pl.BlockSpec((H, 2 * Rp), lambda b: (0, 0)),             # [U | W]
            pl.BlockSpec((1, Rp), lambda b: (0, 0)),                 # bias
        ],
        out_specs=(
            pl.BlockSpec((1, Sp, Rp), lambda b: (b, 0, 0)),
            pl.BlockSpec((1, Sp, Rp), lambda b: (b, 0, 0)),
        ),
        compiler_params=pltpu.CompilerParams(
            dimension_semantics=("parallel",)),
    )(x_p, UW_p, b_p)

    # ---- Stage 2: tiled S x S relation plane, row-chunked, lane-dense out. --
    sig_t, pred_t = pl.pallas_call(
        _relation_tile_kernel,
        out_shape=(
            jax.ShapeDtypeStruct((B, nI * nJ, n_chunks, Cs, chunk_m), f32),
            jax.ShapeDtypeStruct((B, nI * nJ, n_chunks, Cs, chunk_m), jnp.int8),
        ),
        grid=(B, nI, nJ),                     # keep B/i leading for megacore sharding
        in_specs=[
            pl.BlockSpec((1, T, Rp), lambda b, i, j: (b, i, 0)),     # left tile
            pl.BlockSpec((1, T, Rp), lambda b, i, j: (b, j, 0)),     # right tile
            pl.BlockSpec((Rp, Cp), lambda b, i, j: (0, 0)),          # V (padded)
        ],
        out_specs=(
            pl.BlockSpec((1, 1, n_chunks, Cs, chunk_m),
                         lambda b, i, j: (b, i * nJ + j, 0, 0, 0)),
            pl.BlockSpec((1, 1, n_chunks, Cs, chunk_m),
                         lambda b, i, j: (b, i * nJ + j, 0, 0, 0)),
        ),
        compiler_params=pltpu.CompilerParams(
            dimension_semantics=("parallel", "parallel", "parallel")),
    )(left, right, V_p)

    # Reassemble (B, nTiles, n_chunks, Cs, chunk_m) -> (B, S, S, C).
    def _unpack(t):
        t = t.reshape(B, nI, nJ, n_chunks, Cs, chunk_rows, T)
        t = jnp.transpose(t, (0, 1, 3, 5, 2, 6, 4))                  # (B,nI,nc,cr,nJ,T,Cs)
        t = t.reshape(B, Sp, Sp, Cs)
        return t[:, :S, :S, :C]

    return {
        "relation_sigmoid_scores": _unpack(sig_t),
        # int8 {0,1}; values identical to torch.round(torch.sigmoid(scores)).
        "predicted_relations": _unpack(pred_t),
        "mask": attention_mask,
    }


def _reference_scores(x, U, W, V, bias):
    """Pure-JAX f32 reference mirroring the PyTorch permutes."""
    left = jnp.matmul(x, U) + bias                                   # (B, S, R)
    right = jnp.matmul(x, W)                                         # (B, S, R)
    act = jax.nn.relu(left[:, :, None, :] + right[:, None, :, :])    # (B, S, S, R)
    return jnp.matmul(act, V)                                        # (B, S, S, C)


if __name__ == "__main__":
    # Small shapes consistent with the forward:
    #   batch=2, seq=8, hidden=32, dim_relation_embed=16, n_classes=6
    B, S, H, R, C = 2, 8, 32, 16, 6

    key = jax.random.PRNGKey(0)
    k_x, k_u, k_w, k_v, k_b = jax.random.split(key, 5)

    # Deterministic parameter init (mirrors kaiming_normal_ fan_in scaling).
    U = jax.random.normal(k_u, (H, R), jnp.float32) * jnp.sqrt(2.0 / R)
    W = jax.random.normal(k_w, (H, R), jnp.float32) * jnp.sqrt(2.0 / R)
    V = jax.random.normal(k_v, (R, C), jnp.float32) * jnp.sqrt(2.0 / C)
    bias = jax.random.normal(k_b, (R,), jnp.float32)

    # encoded_text stands in for the BERT sequence output (dropout = identity
    # in eval).
    encoded_text = jax.random.normal(k_x, (B, S, H), jnp.float32)
    attention_mask = jnp.ones((B, S), dtype=jnp.int32)

    out = relation_extracter_forward(encoded_text, U, W, V, bias,
                                     attention_mask)
    sig = jax.block_until_ready(out["relation_sigmoid_scores"])
    pred = jax.block_until_ready(out["predicted_relations"])

    assert sig.shape == (B, S, S, C) and sig.dtype == jnp.float32
    assert pred.shape == (B, S, S, C) and pred.dtype == jnp.int8

    # Cross-check against a pure-JAX reference of the same math.
    ref_scores = _reference_scores(encoded_text, U, W, V, bias)
    ref_sig = jax.nn.sigmoid(ref_scores)
    assert jnp.allclose(sig, ref_sig, atol=1e-3, rtol=1e-3), \
        float(jnp.max(jnp.abs(sig - ref_sig)))

    # pred == round(sigmoid(scores)) == (scores > 0); compare away from the
    # decision boundary to dodge floating-point noise.
    ref_pred = (ref_scores > 0).astype(jnp.int8)
    safe = jnp.abs(ref_scores) > 1e-3
    assert bool(jnp.all(jnp.where(safe, pred == ref_pred, True)))
    assert bool(jnp.all((pred == 0) | (pred == 1)))

    print("KERNEL_OK")
</pallas_src>

<mosaic_0001>
module attributes {stable_mosaic.version = 11 : i64} {
  func.func @_proj_kernel(%arg0: i32, %arg1: memref<1x16x32xf32, #tpu.memory_space<vmem>>, %arg2: memref<32x256xf32, #tpu.memory_space<vmem>>, %arg3: memref<1x128xf32, #tpu.memory_space<vmem>>, %arg4: memref<1x16x128xf32, #tpu.memory_space<vmem>>, %arg5: memref<1x16x128xf32, #tpu.memory_space<vmem>>) attributes {dimension_semantics = [#tpu.dimension_semantics<parallel>], iteration_bounds = array<i64: 2>, scalar_prefetch = 0 : i64, scratch_operands = 0 : i64, tpu.core_type = #tpu.core_type<tc>, window_params = [{transform_indices = @transform_0, window_bounds = array<i64: 1, 16, 32>}, {pipeline_mode = #tpu.pipeline_mode<synchronous>, transform_indices = @transform_1, window_bounds = array<i64: 32, 256>}, {pipeline_mode = #tpu.pipeline_mode<synchronous>, transform_indices = @transform_2, window_bounds = array<i64: 1, 128>}, {transform_indices = @transform_3, window_bounds = array<i64: 1, 16, 128>}, {transform_indices = @transform_4, window_bounds = array<i64: 1, 16, 128>}]} {
    %c0 = arith.constant 0 : index
    %c0_0 = arith.constant 0 : index
    %c0_1 = arith.constant 0 : index
    %0 = vector.load %arg1[%c0, %c0_0, %c0_1] : memref<1x16x32xf32, #tpu.memory_space<vmem>>, vector<1x16x32xf32>
    %1 = vector.shape_cast %0 : vector<1x16x32xf32> to vector<16x32xf32>
    %c0_2 = arith.constant 0 : index
    %c0_3 = arith.constant 0 : index
    %2 = vector.load %arg2[%c0_2, %c0_3] : memref<32x256xf32, #tpu.memory_space<vmem>>, vector<32x256xf32>
    %cst = arith.constant dense<0.000000e+00> : vector<16x256xf32>
    %3 = tpu.matmul %1, %2, %cst {dimension_numbers = #tpu.dot_dimension_numbers<[1], [0], [0], [1], [0, 0, 1, 1], [], []>} : vector<16x32xf32>, vector<32x256xf32>, vector<16x256xf32> -> vector<16x256xf32>
    %4 = vector.extract_strided_slice %3 {offsets = [0, 0], sizes = [16, 128], strides = [1, 1]} : vector<16x256xf32> to vector<16x128xf32>
    %c0_4 = arith.constant 0 : index
    %c0_5 = arith.constant 0 : index
    %5 = vector.load %arg3[%c0_4, %c0_5] : memref<1x128xf32, #tpu.memory_space<vmem>>, vector<1x128xf32>
    %6 = vector.broadcast %5 : vector<1x128xf32> to vector<16x128xf32>
    %7 = arith.addf %4, %6 : vector<16x128xf32>
    %c0_6 = arith.constant 0 : index
    %c0_7 = arith.constant 0 : index
    %c0_8 = arith.constant 0 : index
    %8 = vector.load %arg4[%c0_6, %c0_7, %c0_8] : memref<1x16x128xf32, #tpu.memory_space<vmem>>, vector<1x16x128xf32>
    %9 = vector.shape_cast %8 : vector<1x16x128xf32> to vector<16x128xf32>
    %10 = vector.shape_cast %7 : vector<16x128xf32> to vector<1x16x128xf32>
    tpu.vector_store %arg4[%c0_6, %c0_7, %c0_8], %10 {strides = array<i32>} : memref<1x16x128xf32, #tpu.memory_space<vmem>>, vector<1x16x128xf32>,
    %11 = vector.extract_strided_slice %3 {offsets = [0, 128], sizes = [16, 128], strides = [1, 1]} : vector<16x256xf32> to vector<16x128xf32>
    %c0_9 = arith.constant 0 : index
    %c0_10 = arith.constant 0 : index
    %c0_11 = arith.constant 0 : index
    %12 = vector.load %arg5[%c0_9, %c0_10, %c0_11] : memref<1x16x128xf32, #tpu.memory_space<vmem>>, vector<1x16x128xf32>
    %13 = vector.shape_cast %12 : vector<1x16x128xf32> to vector<16x128xf32>
    %14 = vector.shape_cast %11 : vector<16x128xf32> to vector<1x16x128xf32>
    tpu.vector_store %arg5[%c0_9, %c0_10, %c0_11], %14 {strides = array<i32>} : memref<1x16x128xf32, #tpu.memory_space<vmem>>, vector<1x16x128xf32>,
    return
  }
  func.func @transform_0(%arg0: i32) -> (i32, i32, i32) {
    %c0_i32 = arith.constant 0 : i32
    %c0_i32_0 = arith.constant 0 : i32
    %c0_i32_1 = arith.constant 0 : i32
    return %arg0, %c0_i32, %c0_i32_0 : i32, i32, i32
  }
  func.func @transform_1(%arg0: i32) -> (i32, i32) {
    %c0_i32 = arith.constant 0 : i32
    %c0_i32_0 = arith.constant 0 : i32
    %c0_i32_1 = arith.constant 0 : i32
    return %c0_i32, %c0_i32_0 : i32, i32
  }
  func.func @transform_2(%arg0: i32) -> (i32, i32) {
    %c0_i32 = arith.constant 0 : i32
    %c0_i32_0 = arith.constant 0 : i32
    %c0_i32_1 = arith.constant 0 : i32
    return %c0_i32, %c0_i32_0 : i32, i32
  }
  func.func @transform_3(%arg0: i32) -> (i32, i32, i32) {
    %c0_i32 = arith.constant 0 : i32
    %c0_i32_0 = arith.constant 0 : i32
    %c0_i32_1 = arith.constant 0 : i32
    return %arg0, %c0_i32, %c0_i32_0 : i32, i32, i32
  }
  func.func @transform_4(%arg0: i32) -> (i32, i32, i32) {
    %c0_i32 = arith.constant 0 : i32
    %c0_i32_0 = arith.constant 0 : i32
    %c0_i32_1 = arith.constant 0 : i32
    return %arg0, %c0_i32, %c0_i32_0 : i32, i32, i32
  }
}

</mosaic_0001>

<llo_original>
// kernel: tpu_custom_call.1
$region0: #{tpu_custom_call.1}
  #allocation0 [shape = 'u32[]', space=smem, size = 0x4, offset = 0x4, fixed_abs, tag = 'smem constant byte address 0x4 - core index']
  #allocation1 [shape = 'u32[72,128]{1,0:T(1,128)}', space=vmem, size = 0x9000, scoped, tag = 'internal scratch']
  %s0 = inlined_call_operand.hbm [shape: f32[2,16,32], index: 0, kind: input, shape index: {}]
  %s1 = inlined_call_operand.hbm [shape: f32[32,256], index: 1, kind: input, shape index: {}]
  %s2 = inlined_call_operand.vmem [shape: f32[1,128], index: 2, kind: input, shape index: {}]
  %s3 = inlined_call_operand.hbm [shape: f32[2,16,128], index: 3, kind: output, shape index: {0}]
  %s4 = inlined_call_operand.hbm [shape: f32[2,16,128], index: 4, kind: output, shape index: {1}]
  %5 = xla_tuple %s3, %s4
  %s6 = sld [smem:[#allocation0]]
  $region61: #{tpu_custom_call.1} parent=0
    _
  %s8 = ssub.s32 1, %s6
  %s9 = scalar_select 0, %s8, %s6
  $region1: #{tpu_custom_call.1} parent=0
    #allocation2 [shape = 'u8[16384]{0}', space=vmem, size = 0x4000, scoped, tag = 'input window, operand 0']
    #allocation3 [shape = 's32[2]{0}', space=sflag, size = 0x8, scoped, tag = 'scoped memory for tpu_custom_call.1']
    #allocation4 [shape = 's32[2]{0}', space=sflag, size = 0x8, scoped, tag = 'scoped memory for tpu_custom_call.1']
    #allocation5 [shape = 'u8[32768]{0}', space=vmem, size = 0x8000, scoped, tag = 'input window, operand 1, single buffered']
    #allocation6 [shape = 's32[1]{0}', space=sflag, size = 0x4, scoped, tag = 'scoped memory for tpu_custom_call.1']
    #allocation7 [shape = 'u8[16384]{0}', space=vmem, size = 0x4000, scoped, tag = 'output window, operand 0']
    #allocation8 [shape = 'u8[16384]{0}', space=vmem, size = 0x4000, scoped, tag = 'output window, operand 1']
    #allocation9 [shape = 's32[2]{0}', space=sflag, size = 0x8, scoped, tag = 'scoped memory for tpu_custom_call.1']
    %10 = vsyncpa [#allocation3], 0
    %s11 = scalar_lea.sflag [#allocation3], 1
    %12 = vsyncpa %s11, 0
    %13 = vsyncpa [#allocation6], 0
    %14 = vsyncpa [#allocation4], 0
    %s15 = scalar_lea.sflag [#allocation4], 1
    %16 = vsyncpa %s15, 0
    %17 = vsyncpa [#allocation9], 0
    %s18 = scalar_lea.sflag [#allocation9], 1
    %19 = vsyncpa %s18, 0
    loop: start=0, step=1, limit=4
    $region2: #{tpu_custom_call.1} parent=1 // loop_pre_header
      _
    $region3: #{tpu_custom_call.1} parent=1 // loop_header
      %s21 = sphi 0, %s25
      %p22 = scmp.ge.s32.totalorder %s21, 4
      %s31 = sphi 0, %s33
      %s34 = sphi 0, %s31
      %s35 = sphi 0, %s34
      %s51 = sphi 0, %s35
      %s55 = sphi 0, %s55
      %s57 = sphi 0, %s55
      %s58 = sphi 0, %s57
      %s72 = sphi 0, %s58
      %s76 = sphi 0, %s76
      %s78 = sphi 0, %s76
      %s79 = sphi 0, %s78
      %s93 = sphi 0, %s79
      %s99 = sphi 0, %s101
      %s102 = sphi 0, %s99
      %s103 = sphi 0, %s102
      %s119 = sphi 0, %s103
      %s125 = sphi 0, %s127
      %s128 = sphi 0, %s125
      %s129 = sphi 0, %s128
      %s145 = sphi 0, %s129
    $region4: #{tpu_custom_call.1} parent=1 // loop_header_branch
      %24 = sbr.rel (%p22) target = $region8
    $region5: #{tpu_custom_call.1} parent=1 // loop_body
      %s26 = ssub.s32 %s21, 1
      %s27 = ssub.s32 %s21, 2
      %s28 = sadd.s32 %s21, 1
      %s29 = ssub.s32 %s21, %s28
      %p30 = scmp.eq.s32.totalorder %s29, 0
      %s32 = sadd.s32 %s31, 1
      %s33 = scalar_select %p30, %s31, %s32
      %p36 = pneg %p30
      %p37 = scmp.eq.s32.totalorder %s21, 1
      %p38 = por %p36, %p37
      %p39 = scmp.ne.s32.totalorder %s31, %s34
      %p40 = scmp.eq.s32.totalorder %s21, 0
      %p41 = por %p39, %p40
      %p42 = scmp.ne.s32.totalorder %s31, %s34
      %p43 = scmp.eq.s32.totalorder %s26, 1
      %p44 = por %p42, %p43
      %p45 = scmp.ne.s32.totalorder %s34, %s35
      %p46 = scmp.eq.s32.totalorder %s26, 0
      %p47 = por %p45, %p46
      %p48 = scmp.ne.s32.totalorder %s34, %s35
      %p49 = scmp.eq.s32.totalorder %s27, 1
      %p50 = por %p48, %p49
      %p52 = scmp.ne.s32.totalorder %s35, %s51
      %p53 = scmp.eq.s32.totalorder %s27, 0
      %p54 = por %p52, %p53
      %s56 = sadd.s32 %s55, 1
      %p59 = scmp.eq.s32.totalorder %s21, 1
      %p60 = scmp.ne.s32.totalorder %s55, %s57
      %p61 = scmp.eq.s32.totalorder %s21, 0
      %p62 = por %p60, %p61
      %p63 = scmp.ne.s32.totalorder %s55, %s57
      %p64 = scmp.eq.s32.totalorder %s26, 1
      %p65 = por %p63, %p64
      %p66 = scmp.ne.s32.totalorder %s57, %s58
      %p67 = scmp.eq.s32.totalorder %s26, 0
      %p68 = por %p66, %p67
      %p69 = scmp.ne.s32.totalorder %s57, %s58
      %p70 = scmp.eq.s32.totalorder %s27, 1
      %p71 = por %p69, %p70
      %p73 = scmp.ne.s32.totalorder %s58, %s72
      %p74 = scmp.eq.s32.totalorder %s27, 0
      %p75 = por %p73, %p74
      %s77 = sadd.s32 %s76, 1
      %p80 = scmp.eq.s32.totalorder %s21, 1
      %p81 = scmp.ne.s32.totalorder %s76, %s78
      %p82 = scmp.eq.s32.totalorder %s21, 0
      %p83 = por %p81, %p82
      %p84 = scmp.ne.s32.totalorder %s76, %s78
      %p85 = scmp.eq.s32.totalorder %s26, 1
      %p86 = por %p84, %p85
      %p87 = scmp.ne.s32.totalorder %s78, %s79
      %p88 = scmp.eq.s32.totalorder %s26, 0
      %p89 = por %p87, %p88
      %p90 = scmp.ne.s32.totalorder %s78, %s79
      %p91 = scmp.eq.s32.totalorder %s27, 1
      %p92 = por %p90, %p91
      %p94 = scmp.ne.s32.totalorder %s79, %s93
      %p95 = scmp.eq.s32.totalorder %s27, 0
      %p96 = por %p94, %p95
      %s97 = ssub.s32 %s21, %s28
      %p98 = scmp.eq.s32.totalorder %s97, 0
      %s100 = sadd.s32 %s99, 1
      %s101 = scalar_select %p98, %s99, %s100
      %p104 = pneg %p98
      %p105 = scmp.eq.s32.totalorder %s21, 1
      %p106 = por %p104, %p105
      %p107 = scmp.ne.s32.totalorder %s99, %s102
      %p108 = scmp.eq.s32.totalorder %s21, 0
      %p109 = por %p107, %p108
      %p110 = scmp.ne.s32.totalorder %s99, %s102
      %p111 = scmp.eq.s32.totalorder %s26, 1
      %p112 = por %p110, %p111
      %p113 = scmp.ne.s32.totalorder %s102, %s103
      %p114 = scmp.eq.s32.totalorder %s26, 0
      %p115 = por %p113, %p114
      %p116 = scmp.ne.s32.totalorder %s102, %s103
      %p117 = scmp.eq.s32.totalorder %s27, 1
      %p118 = por %p116, %p117
      %p120 = scmp.ne.s32.totalorder %s103, %s119
      %p121 = scmp.eq.s32.totalorder %s27, 0
      %p122 = por %p120, %p121
      %s123 = ssub.s32 %s21, %s28
      %p124 = scmp.eq.s32.totalorder %s123, 0
      %s126 = sadd.s32 %s125, 1
      %s127 = scalar_select %p124, %s125, %s126
      %p130 = pneg %p124
      %p131 = scmp.eq.s32.totalorder %s21, 1
      %p132 = por %p130, %p131
      %p133 = scmp.ne.s32.totalorder %s125, %s128
      %p134 = scmp.eq.s32.totalorder %s21, 0
      %p135 = por %p133, %p134
      %p136 = scmp.ne.s32.totalorder %s125, %s128
      %p137 = scmp.eq.s32.totalorder %s26, 1
      %p138 = por %p136, %p137
      %p139 = scmp.ne.s32.totalorder %s128, %s129
      %p140 = scmp.eq.s32.totalorder %s26, 0
      %p141 = por %p139, %p140
      %p142 = scmp.ne.s32.totalorder %s128, %s129
      %p143 = scmp.eq.s32.totalorder %s27, 1
      %p144 = por %p142, %p143
      %p146 = scmp.ne.s32.totalorder %s129, %s145
      %p147 = scmp.eq.s32.totalorder %s27, 0
      %p148 = por %p146, %p147
      %p149 = scmp.le.s32.totalorder 1, %s21
      %p150 = scmp.lt.s32.totalorder %s21, 3
      %p151 = pnand %p149, %p150
      %p152 = pneg %p151
      // Predicated region
      $region9: #{tpu_custom_call.1} parent=5 // pred_check
        _
      $region10: #{tpu_custom_call.1} parent=5 // pred_check_branch
        %154 = sbr.rel (%p151) target = $region12
      $region11: #{tpu_custom_call.1} parent=5 // pred_region
        %s155 = ssub.s32 %s21, 1
        // Predicated region
        $region13: #{tpu_custom_call.1} parent=11 // pred_check
          %p156 = pneg %p68
        $region14: #{tpu_custom_call.1} parent=11 // pred_check_branch
          %158 = sbr.rel (%p156) target = $region16
        $region15: #{tpu_custom_call.1} parent=11 // pred_region
          %160 = vsyncadd [#allocation6], 0
          %s161 = sshll.u32 %s1, 4
          %s162 = int_to_ptr.hbm [resolvable:$true] %s161
          %s163 = sshll.u32 [#allocation5], 4
          %s164 = int_to_ptr.vmem [resolvable:$true] %s163
          %169 = dma.hbm_to_vmem [thread:$0]  %s162, 1024, %s164, [#allocation6], 256, 256, 16
        $region16: #{tpu_custom_call.1} parent=11 // pred_fallthru
          _
        // Predicated region
        $region17: #{tpu_custom_call.1} parent=11 // pred_check
          %p170 = pneg %p89
        $region18: #{tpu_custom_call.1} parent=11 // pred_check_branch
          %172 = sbr.rel (%p170) target = $region20
        $region19: #{tpu_custom_call.1} parent=11 // pred_region
          _
        $region20: #{tpu_custom_call.1} parent=11 // pred_fallthru
          _
      $region12: #{tpu_custom_call.1} parent=5 // pred_fallthru
        _
      %p173 = scmp.lt.s32.totalorder %s21, 2
      // Predicated region
      $region21: #{tpu_custom_call.1} parent=5 // pred_check
        %p174 = pneg %p173
      $region22: #{tpu_custom_call.1} parent=5 // pred_check_branch
        %176 = sbr.rel (%p174) target = $region24
      $region23: #{tpu_custom_call.1} parent=5 // pred_region
        // Predicated region
        $region25: #{tpu_custom_call.1} parent=23 // pred_check
          %p177 = pneg %p41
        $region26: #{tpu_custom_call.1} parent=23 // pred_check_branch
          %179 = sbr.rel (%p177) target = $region28
        $region27: #{tpu_custom_call.1} parent=23 // pred_region
          %s180 = sand.u32 %s31, 1
          %s181 = scalar_lea.sflag [#allocation3], %s180
          %s182 = sand.u32 %s31, 1
          %s183 = smul.addr %s182, 16
          %s184 = scalar_lea.vmem [#allocation2], %s183
          %186 = vsyncadd %s181, 0
          %s187 = smul.addr %s21, 2
          %s188 = smul.addr %s187, 8
          %s189 = scalar_lea.hbm %s0, %s188
          %s190 = sshll.u32 %s189, 4
          %s191 = int_to_ptr.hbm [resolvable:$true] %s190
          %s192 = sshll.u32 %s184, 4
          %s193 = int_to_ptr.vmem [resolvable:$true] %s192
          %198 = dma.hbm_to_vmem [thread:$0]  %s191, 256, %s193, %s181, 128, 128, 8
        $region28: #{tpu_custom_call.1} parent=23 // pred_fallthru
          _
      $region24: #{tpu_custom_call.1} parent=5 // pred_fallthru
        _
      %p199 = scmp.le.s32.totalorder 1, %s21
      %p200 = scmp.lt.s32.totalorder %s21, 3
      %p201 = pnand %p199, %p200
      %p202 = pneg %p201
      // Predicated region
      $region29: #{tpu_custom_call.1} parent=5 // pred_check
        _
      $region30: #{tpu_custom_call.1} parent=5 // pred_check_branch
        %204 = sbr.rel (%p201) target = $region32
      $region31: #{tpu_custom_call.1} parent=5 // pred_region
        %s205 = ssub.s32 %s21, 1
        %s206 = sand.u32 %s34, 1
        %s207 = scalar_lea.sflag [#allocation3], %s206
        %s208 = sand.u32 %s34, 1
        %s209 = smul.addr %s208, 16
        %s210 = scalar_lea.vmem [#allocation2], %s209
        // Predicated region
        $region33: #{tpu_custom_call.1} parent=31 // pred_check
          %p211 = pneg %p47
        $region34: #{tpu_custom_call.1} parent=31 // pred_check_branch
          %213 = sbr.rel (%p211) target = $region36
        $region35: #{tpu_custom_call.1} parent=31 // pred_region
          %215 = dma.done %s207, 256
        $region36: #{tpu_custom_call.1} parent=31 // pred_fallthru
          _
        // Predicated region
        $region37: #{tpu_custom_call.1} parent=31 // pred_check
          %p216 = pneg %p68
        $region38: #{tpu_custom_call.1} parent=31 // pred_check_branch
          %218 = sbr.rel (%p216) target = $region40
        $region39: #{tpu_custom_call.1} parent=31 // pred_region
          %220 = dma.done [#allocation6], 1024
        $region40: #{tpu_custom_call.1} parent=31 // pred_fallthru
          _
        %s221 = sand.u32 %s34, 1
        %s222 = scalar_lea.sflag [#allocation3], %s221
        %s223 = sand.u32 %s34, 1
        %s224 = smul.addr %s223, 16
        %s225 = scalar_lea.vmem [#allocation2], %s224
        %p226 = pneg %p47
        %p227 = pneg %p44
        %p228 = pneg %p68
        %p229 = pneg %p65
        %p230 = pneg %p89
        %p231 = pneg %p86
        %p232 = pneg %p115
        %p233 = pneg %p112
        %s234 = sand.u32 %s102, 1
        %s235 = scalar_lea.sflag [#allocation4], %s234
        %s236 = sand.u32 %s102, 1
        %s237 = smul.addr %s236, 16
        %s238 = scalar_lea.vmem [#allocation7], %s237
        %p239 = pneg %p141
        %p240 = pneg %p138
        %s241 = sand.u32 %s128, 1
        %s242 = scalar_lea.sflag [#allocation9], %s241
        %s243 = sand.u32 %s128, 1
        %s244 = smul.addr %s243, 16
        %s245 = scalar_lea.vmem [#allocation8], %s244
        %v246 = vld [vmem:[%s210] sm:$0xff]
        %v247 = vld [vmem:[%s210 + $0x8] sm:$0xff]
        %v248 = vld [vmem:[#allocation5] sm:$0xff]
        %v249 = vld [vmem:[#allocation5 + $0x8] sm:$0xff]
        %v250 = vld [vmem:[#allocation5 + $0x10] sm:$0xff]
        %v251 = vld [vmem:[#allocation5 + $0x18] sm:$0xff]
        %v252 = vld [vmem:[#allocation5 + $0x20] sm:$0xff]
        %v253 = vld [vmem:[#allocation5 + $0x28] sm:$0xff]
        %v254 = vld [vmem:[#allocation5 + $0x30] sm:$0xff]
        %v255 = vld [vmem:[#allocation5 + $0x38] sm:$0xff]
        %vm256 = vcmask 261120
        %v258 = vsel %vm256, %v246, 0
        %v261 = vsel %vm256, %v247, 0
        %263 = vmatpush.msra.mxu0 0.0
        %264 = vmatpush.msra.mxu0 0.0
        %265 = vmatpush.msra.mxu0 0.0
        %266 = vmatpush.msra.mxu0 0.0
        %267 = vmatpush.msra.mxu0 0.0
        %268 = vmatpush.msra.mxu0 0.0
        %269 = vmatpush.msra.mxu0 0.0
        %270 = vmatpush.msra.mxu0 0.0
        %271 = vmatpush.msra.mxu0 0.0
        %272 = vmatpush.msra.mxu0 0.0
        %273 = vmatpush.msra.mxu0 0.0
        %274 = vmatpush.msra.mxu0 0.0
        %275 = vmatpush.msra.mxu0 %v254
        %276 = vmatpush.msra.mxu0 %v252
        %277 = vmatpush.msra.mxu0 %v250
        %278 = vmatpush.msra.mxu0 %v248
        %279 = vmatmul.f32.gmra.mxu0 %v258
        %v280 = vpop.f32.mrf.mxu0
        %v281 = vadd.f32 0.0, %v280
        %282 = vmatmul.f32.gmra.mxu0 %v261
        %v283 = vpop.f32.mrf.mxu0
        %v284 = vadd.f32 0.0, %v283
        %285 = vdwg.mxu0
        %286 = vmatpush.msra.mxu0 0.0
        %287 = vmatpush.msra.mxu0 0.0
        %288 = vmatpush.msra.mxu0 0.0
        %289 = vmatpush.msra.mxu0 0.0
        %290 = vmatpush.msra.mxu0 0.0
        %291 = vmatpush.msra.mxu0 0.0
        %292 = vmatpush.msra.mxu0 0.0
        %293 = vmatpush.msra.mxu0 0.0
        %294 = vmatpush.msra.mxu0 0.0
        %295 = vmatpush.msra.mxu0 0.0
        %296 = vmatpush.msra.mxu0 0.0
        %297 = vmatpush.msra.mxu0 0.0
        %298 = vmatpush.msra.mxu0 %v255
        %299 = vmatpush.msra.mxu0 %v253
        %300 = vmatpush.msra.mxu0 %v251
        %301 = vmatpush.msra.mxu0 %v249
        %302 = vmatmul.f32.gmra.mxu0 %v258
        %v303 = vpop.f32.mrf.mxu0
        %v304 = vadd.f32 0.0, %v303
        %305 = vmatmul.f32.gmra.mxu0 %v261
        %v306 = vpop.f32.mrf.mxu0
        %v307 = vadd.f32 0.0, %v306
        %308 = vdwg.mxu0
        %v309 = vld [vmem:[%s2] sm:$0x1]
        %v311 = vperm.slane %v309, 0
        %v313 = vadd.f32 %v281, %v311
        %v314 = vadd.f32 %v284, %v311
        %315 = vst [vmem:[%s238] sm:$0xff] %v313
        %316 = vst [vmem:[%s238 + $0x8] sm:$0xff] %v314
        %317 = vst [vmem:[%s245] sm:$0xff] %v304
        %318 = vst [vmem:[%s245 + $0x8] sm:$0xff] %v307
        %s319 = sand.u32 %s102, 1
        %s320 = scalar_lea.sflag [#allocation4], %s319
        %s321 = sand.u32 %s102, 1
        %s322 = smul.addr %s321, 16
        %s323 = scalar_lea.vmem [#allocation7], %s322
        %s324 = sand.u32 %s128, 1
        %s325 = scalar_lea.sflag [#allocation9], %s324
        %s326 = sand.u32 %s128, 1
        %s327 = smul.addr %s326, 16
        %s328 = scalar_lea.vmem [#allocation8], %s327
        // Predicated region
        $region41: #{tpu_custom_call.1} parent=31 // pred_check
          %p329 = pneg %p112
        $region42: #{tpu_custom_call.1} parent=31 // pred_check_branch
          %331 = sbr.rel (%p329) target = $region44
        $region43: #{tpu_custom_call.1} parent=31 // pred_region
          %333 = vsyncadd %s320, 0
          %s334 = smul.addr %s26, 2
          %s335 = smul.addr %s334, 8
          %s336 = scalar_lea.hbm %s3, %s335
          %s337 = sshll.u32 %s323, 4
          %s338 = int_to_ptr.vmem [resolvable:$true] %s337
          %s339 = sshll.u32 %s336, 4
          %s340 = int_to_ptr.hbm [resolvable:$true] %s339
          %345 = dma.vmem_to_hbm [thread:$0]  %s338, 256, %s340, %s320, 128, 128, 8
        $region44: #{tpu_custom_call.1} parent=31 // pred_fallthru
          _
        // Predicated region
        $region45: #{tpu_custom_call.1} parent=31 // pred_check
          %p346 = pneg %p138
        $region46: #{tpu_custom_call.1} parent=31 // pred_check_branch
          %348 = sbr.rel (%p346) target = $region48
        $region47: #{tpu_custom_call.1} parent=31 // pred_region
          %350 = vsyncadd %s325, 0
          %s351 = smul.addr %s26, 2
          %s352 = smul.addr %s351, 8
          %s353 = scalar_lea.hbm %s4, %s352
          %s354 = sshll.u32 %s328, 4
          %s355 = int_to_ptr.vmem [resolvable:$true] %s354
          %s356 = sshll.u32 %s353, 4
          %s357 = int_to_ptr.hbm [resolvable:$true] %s356
          %362 = dma.vmem_to_hbm [thread:$0]  %s355, 256, %s357, %s325, 128, 128, 8
        $region48: #{tpu_custom_call.1} parent=31 // pred_fallthru
          _
      $region32: #{tpu_custom_call.1} parent=5 // pred_fallthru
        _
      %p363 = scmp.le.s32.totalorder 2, %s21
      // Predicated region
      $region49: #{tpu_custom_call.1} parent=5 // pred_check
        %p364 = pneg %p363
      $region50: #{tpu_custom_call.1} parent=5 // pred_check_branch
        %366 = sbr.rel (%p364) target = $region52
      $region51: #{tpu_custom_call.1} parent=5 // pred_region
        %s367 = ssub.s32 %s21, 2
        // Predicated region
        $region53: #{tpu_custom_call.1} parent=51 // pred_check
          %p368 = pneg %p118
        $region54: #{tpu_custom_call.1} parent=51 // pred_check_branch
          %370 = sbr.rel (%p368) target = $region56
        $region55: #{tpu_custom_call.1} parent=51 // pred_region
          %s371 = sand.u32 %s103, 1
          %s372 = scalar_lea.sflag [#allocation4], %s371
          %s373 = sand.u32 %s103, 1
          %s374 = smul.addr %s373, 16
          %s375 = scalar_lea.vmem [#allocation7], %s374
          %377 = dma.done %s372, 256
        $region56: #{tpu_custom_call.1} parent=51 // pred_fallthru
          _
        // Predicated region
        $region57: #{tpu_custom_call.1} parent=51 // pred_check
          %p378 = pneg %p144
        $region58: #{tpu_custom_call.1} parent=51 // pred_check_branch
          %380 = sbr.rel (%p378) target = $region60
        $region59: #{tpu_custom_call.1} parent=51 // pred_region
          %s381 = sand.u32 %s129, 1
          %s382 = scalar_lea.sflag [#allocation9], %s381
          %s383 = sand.u32 %s129, 1
          %s384 = smul.addr %s383, 16
          %s385 = scalar_lea.vmem [#allocation8], %s384
          %387 = dma.done %s382, 256
        $region60: #{tpu_custom_call.1} parent=51 // pred_fallthru
          _
      $region52: #{tpu_custom_call.1} parent=5 // pred_fallthru
        _
    $region6: #{tpu_custom_call.1} parent=1 // loop_footer
      %s25 = sadd.s32 1, %s21
    $region7: #{tpu_custom_call.1} parent=1 // loop_footer_branch
      %20 = sbr.rel target = $region3
    $region8: #{tpu_custom_call.1} parent=1 // loop_exit
      _
    %388 = vsyncpa [#allocation3], 1
    %s389 = scalar_lea.sflag [#allocation3], 1
    %390 = vsyncpa %s389, 1
    %391 = vsyncpa [#allocation6], 1
    %392 = vsyncpa [#allocation4], 1
    %s393 = scalar_lea.sflag [#allocation4], 1
    %394 = vsyncpa %s393, 1
    %395 = vsyncpa [#allocation9], 1
    %s396 = scalar_lea.sflag [#allocation9], 1
    %397 = vsyncpa %s396, 1

</llo_original>
